<compile_context>
chip_gen: v6e
topology: v6e:2x2x1
jax: 0.10.0
libtpu: 0.0.40
codegen_flags: <defaults>
</compile_context>

<pallas_src>
import math

import jax
import jax.numpy as jnp
from jax.experimental import pallas as pl
from jax.experimental.pallas import tpu as pltpu

_LANE = 128
_EPS_COS = 1e-8      # nn.CosineSimilarity default eps
_EPS_LOG = 1e-8      # explicit constant in forward()
_MAX_TILE_B = 128    # bounds the f32 accumulator scratch at 4 MiB


def _cosface_partial_kernel(a_ref, b_ref, c_ref, d_ref, out_ref, acc_ref):
    """Accumulate the 8 per-row reductions for one (split, batch block)."""
    ki = pl.program_id(2)
    nk = pl.num_programs(2)

    @pl.when(ki == 0)
    def _init():
        acc_ref[...] = jnp.zeros_like(acc_ref)

    # In-kernel upcast (hidden under the DMA); inputs arrive in native dtype.
    a = a_ref[...].astype(jnp.float32)
    b = b_ref[...].astype(jnp.float32)
    c = c_ref[...].astype(jnp.float32)
    d = d_ref[...].astype(jnp.float32)

    tb, tr, _ = a_ref.shape
    sub = acc_ref.shape[2]          # 8 (vreg-shaped partials) or 1 (tiny-rows case)

    def fold(x, y):
        p = x * y                                      # (tb, tr, 128) f32
        if sub == 1:                                   # static; only when nk == 1
            return jnp.sum(p, axis=1, keepdims=True)   # (tb, 1, 128)
        # Pure vreg adds: split the sublane axis into (tr//8, 8) vreg groups and
        # reduce the group axis -- no per-step cross-sublane (XLU) work.
        return jnp.sum(p.reshape(tb, tr // 8, 8, _LANE), axis=1)   # (tb, 8, 128)

    acc_ref[0] += fold(a, c)   # <zs_d , zd >
    acc_ref[1] += fold(b, c)   # <zss_d, zd >
    acc_ref[2] += fold(a, d)   # <zs_d , zds>
    acc_ref[3] += fold(b, d)   # <zss_d, zds>
    acc_ref[4] += fold(a, a)   # ||zs_d ||^2
    acc_ref[5] += fold(b, b)   # ||zss_d||^2
    acc_ref[6] += fold(c, c)   # ||zd  ||^2
    acc_ref[7] += fold(d, d)   # ||zds ||^2

    @pl.when(ki == nk - 1)
    def _emit():
        # Single cross-sublane collapse per (split, batch block); lane-dense store.
        out_ref[0] = jnp.sum(acc_ref[...], axis=2)     # (8, tb, 128)


def _round_down(x, m):
    return (x // m) * m


def _vmem_capacity_bytes():
    try:
        return int(pltpu.get_tpu_info().vmem_capacity_bytes)
    except Exception:
        return 64 * 1024 * 1024     # conservative (v7x-sized) fallback


def _plan_rows(rows, cap_rows, align, parts):
    """Pick (num_k, tile_r): parts*num_k tiles of tile_r rows (tile_r % 8 == 0
    unless it is the full extent) covering <= rows; leftovers go to XLA."""
    if parts == 1 and rows <= cap_rows:
        return 1, rows                                  # full-extent block, one step
    per_part = rows // parts                            # >= 8 whenever reached
    num_k = max(1, -(-per_part // cap_rows))
    tile_r = _round_down(per_part // num_k, align)
    if tile_r == 0:
        tile_r = _round_down(per_part // num_k, 8)
    if tile_r == 0:
        tile_r = 8
        num_k = max(1, per_part // 8)
    return num_k, tile_r


def _pair_sums(a, b, c, d):
    """The 8 per-row reductions, stacked as (8, B)."""
    return jnp.stack([
        jnp.sum(a * c, -1), jnp.sum(b * c, -1),
        jnp.sum(a * d, -1), jnp.sum(b * d, -1),
        jnp.sum(a * a, -1), jnp.sum(b * b, -1),
        jnp.sum(c * c, -1), jnp.sum(d * d, -1)], axis=0)


def _finalize(sums, batch, s, m):
    """O(B) epilogue: cos (per-norm eps clamp, matching torch), exp/log, mean."""
    dot_ac, dot_bc, dot_ad, dot_bd, ss_a, ss_b, ss_c, ss_d = sums
    na, nb, nc, nd = (jnp.maximum(jnp.sqrt(v), _EPS_COS)
                      for v in (ss_a, ss_b, ss_c, ss_d))

    def cos_dist(dot, nx, ny):
        return s * (dot / (nx * ny) - m)

    p1 = jnp.exp(cos_dist(dot_ac, na, nc))
    p2 = jnp.exp(cos_dist(dot_bc, nb, nc))
    n1 = jnp.exp(cos_dist(dot_ad, na, nd))
    n2 = jnp.exp(cos_dist(dot_bd, nb, nd))
    neg = n1 + n2
    return jnp.sum(-(jnp.log(p1 / (p1 + neg) + _EPS_LOG)
                     + jnp.log(p2 / (p2 + neg) + _EPS_LOG))) / batch


def cosface_loss(zs_d, zss_d, zd, zds, *, s, m, target_step_bytes=None):
    """Pallas CosFace forward. Inputs: (B, ...) tensors in their native dtype."""
    B = zs_d.shape[0]
    D = math.prod(zs_d.shape[1:])
    itemsize = int(jnp.dtype(zs_d.dtype).itemsize)
    pref_align = 8 * max(1, 4 // itemsize)          # 8 for f32, 16 for bf16, ...

    rows_all = D // _LANE
    lane_tail = D - rows_all * _LANE

    if rows_all == 0:
        # D < one lane width: the whole problem is tiny -- plain XLA.
        flat = [x.reshape(B, D).astype(jnp.float32) for x in (zs_d, zss_d, zd, zds)]
        return _finalize(_pair_sums(*flat), B, s, m)

    # ---- per-step input payload target (dtype- and generation-aware) --------
    vmem_cap = _vmem_capacity_bytes()
    target_payload = target_step_bytes or min(8 << 20, vmem_cap // 8)

    # ---- batch tiling: grow past 8 when D is small -------------------------
    bytes_per_sample = 4 * rows_all * _LANE * itemsize
    if B <= 8:
        tile_b = B
    elif bytes_per_sample >= target_payload:
        tile_b = 8
    else:
        want = -(-target_payload // bytes_per_sample)
        if want >= B and B <= _MAX_TILE_B:
            tile_b = B
        else:
            tile_b = max(8, _round_down(min(want, B, _MAX_TILE_B), 8))
    num_b = pl.cdiv(B, tile_b)

    # ---- row (D) tiling, budgeted against VMEM -----------------------------
    per_row_bytes = 4 * tile_b * _LANE * itemsize
    cap_rows = max(8, _round_down(target_payload // per_row_bytes, pref_align))

    # Split the D range across a leading parallel axis when there is only one
    # batch block (keeps both v7x TensorCores busy; exact, since these are sums).
    parts = 2 if (num_b == 1 and rows_all >= 64) else 1
    num_k, tile_r = _plan_rows(rows_all, cap_rows, pref_align, parts)
    covered = parts * num_k * tile_r
    if parts == 2 and (rows_all - covered) * 8 > rows_all:
        parts = 1
        num_k, tile_r = _plan_rows(rows_all, cap_rows, pref_align, 1)
        covered = num_k * tile_r

    sub = 8 if tile_r % 8 == 0 else 1

    # ---- operands: native dtype, no padding / no copies on the common path --
    def prep(x):
        xf = x.reshape(B, D)
        if lane_tail:
            # D % 128 != 0 edge case: one contiguous-slab copy of the main body
            # (the common D % 128 == 0 path is a free reshape).
            xf = xf[:, : rows_all * _LANE]
        return xf.reshape(B, rows_all, _LANE)

    a3, b3, c3, d3 = prep(zs_d), prep(zss_d), prep(zd), prep(zds)

    in_spec = pl.BlockSpec((tile_b, tile_r, _LANE),
                           lambda si, bi, ki: (bi, si * num_k + ki, 0))
    out_spec = pl.BlockSpec((1, 8, tile_b, _LANE),
                            lambda si, bi, ki: (si, 0, bi, 0))

    # ---- explicit VMEM limit: double-buffered inputs + scratch + out + margin
    in_step_bytes = 4 * tile_b * tile_r * _LANE * itemsize
    acc_bytes = 8 * tile_b * sub * _LANE * 4
    out_block_bytes = 8 * tile_b * _LANE * 4
    vmem_need = 2 * in_step_bytes + acc_bytes + 2 * out_block_bytes + (4 << 20)
    vmem_limit = int(min(max(vmem_need, 32 << 20), (vmem_cap * 3) // 4))

    cost = pl.CostEstimate(
        flops=16 * B * D,
        transcendentals=0,
        bytes_accessed=4 * B * D * itemsize + parts * 8 * B * _LANE * 4)

    partials = pl.pallas_call(
        _cosface_partial_kernel,
        out_shape=jax.ShapeDtypeStruct((parts, 8, B, _LANE), jnp.float32),
        grid_spec=pltpu.PrefetchScalarGridSpec(
            num_scalar_prefetch=0,
            grid=(parts, num_b, num_k),
            in_specs=[in_spec, in_spec, in_spec, in_spec],
            out_specs=out_spec,
            scratch_shapes=[pltpu.VMEM((8, tile_b, sub, _LANE), jnp.float32)],
        ),
        compiler_params=pltpu.CompilerParams(
            dimension_semantics=("parallel", "parallel", "arbitrary"),
            vmem_limit_bytes=vmem_limit),
        cost_estimate=cost,
    )(a3, b3, c3, d3)

    # lane + split collapse of the kernel's exact partial sums: (8, B)
    sums = jnp.sum(partials, axis=(0, 3))

    # Rows not covered by full tiles plus any D % 128 tail: reduced by XLA
    # (traffic proportional to the leftover only; exact, since these are sums).
    rem_cols = []
    if covered < rows_all:
        rem_cols.append((covered * _LANE, rows_all * _LANE))
    if lane_tail:
        rem_cols.append((rows_all * _LANE, D))
    if rem_cols:
        flat = [x.reshape(B, D).astype(jnp.float32) for x in (zs_d, zss_d, zd, zds)]
        ea, eb, ec, ed = [jnp.concatenate([f[:, lo:hi] for lo, hi in rem_cols], axis=1)
                          for f in flat]
        sums = sums + _pair_sums(ea, eb, ec, ed)

    return _finalize(sums, B, s, m)


def _reference(zs_d, zss_d, zd, zds, *, s, m):
    B = zs_d.shape[0]
    flat = lambda x: x.reshape(B, -1).astype(jnp.float32)
    a, b, c, d = map(flat, (zs_d, zss_d, zd, zds))

    def cs(x, y):
        nx = jnp.maximum(jnp.linalg.norm(x, axis=-1), 1e-8)
        ny = jnp.maximum(jnp.linalg.norm(y, axis=-1), 1e-8)
        return jnp.sum(x * y, axis=-1) / (nx * ny)

    cd = lambda x, y: s * (cs(x, y) - m)
    p1, p2 = jnp.exp(cd(a, c)), jnp.exp(cd(b, c))
    n1, n2 = jnp.exp(cd(a, d)), jnp.exp(cd(b, d))
    return jnp.sum(-(jnp.log(p1 / (p1 + n1 + n2) + 1e-8)
                     + jnp.log(p2 / (p2 + n1 + n2) + 1e-8))) / B


if __name__ == "__main__":
    s_param, m_param = 30.0, 0.35      # CosFace hyperparameters (module __init__)
    key = jax.random.PRNGKey(0)

    def make(shape, dtype=jnp.float32):
        nonlocal_keys = jax.random.split(make.key, 5)
        make.key = nonlocal_keys[0]
        return [jax.random.normal(k, shape, dtype=dtype) for k in nonlocal_keys[1:]]
    make.key = key

    # 1) Baseline NCHW shape: (2, 4, 16, 16) -> D = 1024, single grid step.
    xs = make((2, 4, 16, 16))
    loss = jax.block_until_ready(cosface_loss(*xs, s=s_param, m=m_param))
    ref = _reference(*xs, s=s_param, m=m_param)
    assert jnp.allclose(loss, ref, rtol=1e-4, atol=1e-5), (loss, ref)

    # 2) Native bf16 path: bf16 DMA + in-kernel upcast.
    xs_bf16 = [x.astype(jnp.bfloat16) for x in xs]
    loss_bf = jax.block_until_ready(cosface_loss(*xs_bf16, s=s_param, m=m_param))
    ref_bf = _reference(*xs_bf16, s=s_param, m=m_param)
    assert jnp.allclose(loss_bf, ref_bf, rtol=1e-3, atol=1e-3), (loss_bf, ref_bf)

    # 3) Small batch / larger D: exercises the 2-way D-split (megacore) path.
    ys = make((4, 8, 32, 32))          # D = 8192
    loss3 = jax.block_until_ready(cosface_loss(*ys, s=s_param, m=m_param))
    ref3 = _reference(*ys, s=s_param, m=m_param)
    assert jnp.allclose(loss3, ref3, rtol=1e-4, atol=1e-5), (loss3, ref3)

    # 4) Forced tiny per-step budget: exercises multi-step D accumulation.
    zs = make((3, 4, 32, 32))          # D = 4096
    loss4 = jax.block_until_ready(
        cosface_loss(*zs, s=s_param, m=m_param, target_step_bytes=16 * 1024))
    ref4 = _reference(*zs, s=s_param, m=m_param)
    assert jnp.allclose(loss4, ref4, rtol=1e-4, atol=1e-5), (loss4, ref4)

    print("KERNEL_OK")
</pallas_src>

<mosaic_0001>
module attributes {stable_mosaic.version = 11 : i64} {
  func.func @_cosface_partial_kernel(%arg0: i32, %arg1: i32, %arg2: i32, %arg3: memref<2x8x128xf32, #tpu.memory_space<vmem>>, %arg4: memref<2x8x128xf32, #tpu.memory_space<vmem>>, %arg5: memref<2x8x128xf32, #tpu.memory_space<vmem>>, %arg6: memref<2x8x128xf32, #tpu.memory_space<vmem>>, %arg7: memref<1x8x2x128xf32, #tpu.memory_space<vmem>>, %arg8: memref<8x2x8x128xf32, #tpu.memory_space<vmem>>) attributes {dimension_semantics = [#tpu.dimension_semantics<parallel>, #tpu.dimension_semantics<parallel>, #tpu.dimension_semantics<arbitrary>], iteration_bounds = array<i64: 1, 1, 1>, scalar_prefetch = 0 : i64, scratch_operands = 1 : i64, tpu.core_type = #tpu.core_type<tc>, window_params = [{transform_indices = @transform_0, window_bounds = array<i64: 2, 8, 128>}, {transform_indices = @transform_1, window_bounds = array<i64: 2, 8, 128>}, {transform_indices = @transform_2, window_bounds = array<i64: 2, 8, 128>}, {transform_indices = @transform_3, window_bounds = array<i64: 2, 8, 128>}, {transform_indices = @transform_4, window_bounds = array<i64: 1, 8, 2, 128>}]} {
    %c0_i32 = arith.constant 0 : i32
    %0 = arith.cmpi eq, %arg2, %c0_i32 : i32
    %1 = arith.extui %0 : i1 to i32
    %c0_i32_0 = arith.constant 0 : i32
    %2 = arith.cmpi ne, %1, %c0_i32_0 : i32
    scf.if %2 {
      %cst_78 = arith.constant 0.000000e+00 : f32
      %82 = vector.broadcast %cst_78 : f32 to vector<8x2x8x128xf32>
      %c0_79 = arith.constant 0 : index
      %c0_80 = arith.constant 0 : index
      %c0_81 = arith.constant 0 : index
      %c0_82 = arith.constant 0 : index
      %83 = vector.load %arg8[%c0_79, %c0_80, %c0_81, %c0_82] : memref<8x2x8x128xf32, #tpu.memory_space<vmem>>, vector<8x2x8x128xf32>
      tpu.vector_store %arg8[%c0_79, %c0_80, %c0_81, %c0_82], %82 {strides = array<i32>} : memref<8x2x8x128xf32, #tpu.memory_space<vmem>>, vector<8x2x8x128xf32>,
    } else {
    }
    %c0 = arith.constant 0 : index
    %c0_1 = arith.constant 0 : index
    %c0_2 = arith.constant 0 : index
    %3 = vector.load %arg3[%c0, %c0_1, %c0_2] : memref<2x8x128xf32, #tpu.memory_space<vmem>>, vector<2x8x128xf32>
    %c0_3 = arith.constant 0 : index
    %c0_4 = arith.constant 0 : index
    %c0_5 = arith.constant 0 : index
    %4 = vector.load %arg4[%c0_3, %c0_4, %c0_5] : memref<2x8x128xf32, #tpu.memory_space<vmem>>, vector<2x8x128xf32>
    %c0_6 = arith.constant 0 : index
    %c0_7 = arith.constant 0 : index
    %c0_8 = arith.constant 0 : index
    %5 = vector.load %arg5[%c0_6, %c0_7, %c0_8] : memref<2x8x128xf32, #tpu.memory_space<vmem>>, vector<2x8x128xf32>
    %c0_9 = arith.constant 0 : index
    %c0_10 = arith.constant 0 : index
    %c0_11 = arith.constant 0 : index
    %6 = vector.load %arg6[%c0_9, %c0_10, %c0_11] : memref<2x8x128xf32, #tpu.memory_space<vmem>>, vector<2x8x128xf32>
    %c0_12 = arith.constant 0 : index
    %c0_13 = arith.constant 0 : index
    %c0_14 = arith.constant 0 : index
    %c0_15 = arith.constant 0 : index
    %7 = vector.load %arg8[%c0_12, %c0_13, %c0_14, %c0_15] : memref<8x2x8x128xf32, #tpu.memory_space<vmem>>, vector<1x2x8x128xf32>
    %8 = vector.shape_cast %7 : vector<1x2x8x128xf32> to vector<2x8x128xf32>
    %9 = arith.mulf %3, %5 : vector<2x8x128xf32>
    %10 = vector.shape_cast %9 : vector<2x8x128xf32> to vector<2x1x8x128xf32>
    %cst = arith.constant dense<0.000000e+00> : vector<2x8x128xf32>
    %11 = vector.multi_reduction <add>, %10, %cst [1] : vector<2x1x8x128xf32> to vector<2x8x128xf32>
    %12 = arith.addf %8, %11 : vector<2x8x128xf32>
    %c0_16 = arith.constant 0 : index
    %c0_17 = arith.constant 0 : index
    %c0_18 = arith.constant 0 : index
    %c0_19 = arith.constant 0 : index
    %13 = vector.load %arg8[%c0_16, %c0_17, %c0_18, %c0_19] : memref<8x2x8x128xf32, #tpu.memory_space<vmem>>, vector<1x2x8x128xf32>
    %14 = vector.shape_cast %13 : vector<1x2x8x128xf32> to vector<2x8x128xf32>
    %15 = vector.shape_cast %12 : vector<2x8x128xf32> to vector<1x2x8x128xf32>
    tpu.vector_store %arg8[%c0_16, %c0_17, %c0_18, %c0_19], %15 {strides = array<i32>} : memref<8x2x8x128xf32, #tpu.memory_space<vmem>>, vector<1x2x8x128xf32>,
    %c1 = arith.constant 1 : index
    %c0_20 = arith.constant 0 : index
    %c0_21 = arith.constant 0 : index
    %c0_22 = arith.constant 0 : index
    %16 = vector.load %arg8[%c1, %c0_20, %c0_21, %c0_22] : memref<8x2x8x128xf32, #tpu.memory_space<vmem>>, vector<1x2x8x128xf32>
    %17 = vector.shape_cast %16 : vector<1x2x8x128xf32> to vector<2x8x128xf32>
    %18 = arith.mulf %4, %5 : vector<2x8x128xf32>
    %19 = vector.shape_cast %18 : vector<2x8x128xf32> to vector<2x1x8x128xf32>
    %cst_23 = arith.constant dense<0.000000e+00> : vector<2x8x128xf32>
    %20 = vector.multi_reduction <add>, %19, %cst_23 [1] : vector<2x1x8x128xf32> to vector<2x8x128xf32>
    %21 = arith.addf %17, %20 : vector<2x8x128xf32>
    %c1_24 = arith.constant 1 : index
    %c0_25 = arith.constant 0 : index
    %c0_26 = arith.constant 0 : index
    %c0_27 = arith.constant 0 : index
    %22 = vector.load %arg8[%c1_24, %c0_25, %c0_26, %c0_27] : memref<8x2x8x128xf32, #tpu.memory_space<vmem>>, vector<1x2x8x128xf32>
    %23 = vector.shape_cast %22 : vector<1x2x8x128xf32> to vector<2x8x128xf32>
    %24 = vector.shape_cast %21 : vector<2x8x128xf32> to vector<1x2x8x128xf32>
    tpu.vector_store %arg8[%c1_24, %c0_25, %c0_26, %c0_27], %24 {strides = array<i32>} : memref<8x2x8x128xf32, #tpu.memory_space<vmem>>, vector<1x2x8x128xf32>,
    %c2 = arith.constant 2 : index
    %c0_28 = arith.constant 0 : index
    %c0_29 = arith.constant 0 : index
    %c0_30 = arith.constant 0 : index
    %25 = vector.load %arg8[%c2, %c0_28, %c0_29, %c0_30] : memref<8x2x8x128xf32, #tpu.memory_space<vmem>>, vector<1x2x8x128xf32>
    %26 = vector.shape_cast %25 : vector<1x2x8x128xf32> to vector<2x8x128xf32>
    %27 = arith.mulf %3, %6 : vector<2x8x128xf32>
    %28 = vector.shape_cast %27 : vector<2x8x128xf32> to vector<2x1x8x128xf32>
    %cst_31 = arith.constant dense<0.000000e+00> : vector<2x8x128xf32>
    %29 = vector.multi_reduction <add>, %28, %cst_31 [1] : vector<2x1x8x128xf32> to vector<2x8x128xf32>
    %30 = arith.addf %26, %29 : vector<2x8x128xf32>
    %c2_32 = arith.constant 2 : index
    %c0_33 = arith.constant 0 : index
    %c0_34 = arith.constant 0 : index
    %c0_35 = arith.constant 0 : index
    %31 = vector.load %arg8[%c2_32, %c0_33, %c0_34, %c0_35] : memref<8x2x8x128xf32, #tpu.memory_space<vmem>>, vector<1x2x8x128xf32>
    %32 = vector.shape_cast %31 : vector<1x2x8x128xf32> to vector<2x8x128xf32>
    %33 = vector.shape_cast %30 : vector<2x8x128xf32> to vector<1x2x8x128xf32>
    tpu.vector_store %arg8[%c2_32, %c0_33, %c0_34, %c0_35], %33 {strides = array<i32>} : memref<8x2x8x128xf32, #tpu.memory_space<vmem>>, vector<1x2x8x128xf32>,
    %c3 = arith.constant 3 : index
    %c0_36 = arith.constant 0 : index
    %c0_37 = arith.constant 0 : index
    %c0_38 = arith.constant 0 : index
    %34 = vector.load %arg8[%c3, %c0_36, %c0_37, %c0_38] : memref<8x2x8x128xf32, #tpu.memory_space<vmem>>, vector<1x2x8x128xf32>
    %35 = vector.shape_cast %34 : vector<1x2x8x128xf32> to vector<2x8x128xf32>
    %36 = arith.mulf %4, %6 : vector<2x8x128xf32>
    %37 = vector.shape_cast %36 : vector<2x8x128xf32> to vector<2x1x8x128xf32>
    %cst_39 = arith.constant dense<0.000000e+00> : vector<2x8x128xf32>
    %38 = vector.multi_reduction <add>, %37, %cst_39 [1] : vector<2x1x8x128xf32> to vector<2x8x128xf32>
    %39 = arith.addf %35, %38 : vector<2x8x128xf32>
    %c3_40 = arith.constant 3 : index
    %c0_41 = arith.constant 0 : index
    %c0_42 = arith.constant 0 : index
    %c0_43 = arith.constant 0 : index
    %40 = vector.load %arg8[%c3_40, %c0_41, %c0_42, %c0_43] : memref<8x2x8x128xf32, #tpu.memory_space<vmem>>, vector<1x2x8x128xf32>
    %41 = vector.shape_cast %40 : vector<1x2x8x128xf32> to vector<2x8x128xf32>
    %42 = vector.shape_cast %39 : vector<2x8x128xf32> to vector<1x2x8x128xf32>
    tpu.vector_store %arg8[%c3_40, %c0_41, %c0_42, %c0_43], %42 {strides = array<i32>} : memref<8x2x8x128xf32, #tpu.memory_space<vmem>>, vector<1x2x8x128xf32>,
    %c4 = arith.constant 4 : index
    %c0_44 = arith.constant 0 : index
    %c0_45 = arith.constant 0 : index
    %c0_46 = arith.constant 0 : index
    %43 = vector.load %arg8[%c4, %c0_44, %c0_45, %c0_46] : memref<8x2x8x128xf32, #tpu.memory_space<vmem>>, vector<1x2x8x128xf32>
    %44 = vector.shape_cast %43 : vector<1x2x8x128xf32> to vector<2x8x128xf32>
    %45 = arith.mulf %3, %3 : vector<2x8x128xf32>
    %46 = vector.shape_cast %45 : vector<2x8x128xf32> to vector<2x1x8x128xf32>
    %cst_47 = arith.constant dense<0.000000e+00> : vector<2x8x128xf32>
    %47 = vector.multi_reduction <add>, %46, %cst_47 [1] : vector<2x1x8x128xf32> to vector<2x8x128xf32>
    %48 = arith.addf %44, %47 : vector<2x8x128xf32>
    %c4_48 = arith.constant 4 : index
    %c0_49 = arith.constant 0 : index
    %c0_50 = arith.constant 0 : index
    %c0_51 = arith.constant 0 : index
    %49 = vector.load %arg8[%c4_48, %c0_49, %c0_50, %c0_51] : memref<8x2x8x128xf32, #tpu.memory_space<vmem>>, vector<1x2x8x128xf32>
    %50 = vector.shape_cast %49 : vector<1x2x8x128xf32> to vector<2x8x128xf32>
    %51 = vector.shape_cast %48 : vector<2x8x128xf32> to vector<1x2x8x128xf32>
    tpu.vector_store %arg8[%c4_48, %c0_49, %c0_50, %c0_51], %51 {strides = array<i32>} : memref<8x2x8x128xf32, #tpu.memory_space<vmem>>, vector<1x2x8x128xf32>,
    %c5 = arith.constant 5 : index
    %c0_52 = arith.constant 0 : index
    %c0_53 = arith.constant 0 : index
    %c0_54 = arith.constant 0 : index
    %52 = vector.load %arg8[%c5, %c0_52, %c0_53, %c0_54] : memref<8x2x8x128xf32, #tpu.memory_space<vmem>>, vector<1x2x8x128xf32>
    %53 = vector.shape_cast %52 : vector<1x2x8x128xf32> to vector<2x8x128xf32>
    %54 = arith.mulf %4, %4 : vector<2x8x128xf32>
    %55 = vector.shape_cast %54 : vector<2x8x128xf32> to vector<2x1x8x128xf32>
    %cst_55 = arith.constant dense<0.000000e+00> : vector<2x8x128xf32>
    %56 = vector.multi_reduction <add>, %55, %cst_55 [1] : vector<2x1x8x128xf32> to vector<2x8x128xf32>
    %57 = arith.addf %53, %56 : vector<2x8x128xf32>
    %c5_56 = arith.constant 5 : index
    %c0_57 = arith.constant 0 : index
    %c0_58 = arith.constant 0 : index
    %c0_59 = arith.constant 0 : index
    %58 = vector.load %arg8[%c5_56, %c0_57, %c0_58, %c0_59] : memref<8x2x8x128xf32, #tpu.memory_space<vmem>>, vector<1x2x8x128xf32>
    %59 = vector.shape_cast %58 : vector<1x2x8x128xf32> to vector<2x8x128xf32>
    %60 = vector.shape_cast %57 : vector<2x8x128xf32> to vector<1x2x8x128xf32>
    tpu.vector_store %arg8[%c5_56, %c0_57, %c0_58, %c0_59], %60 {strides = array<i32>} : memref<8x2x8x128xf32, #tpu.memory_space<vmem>>, vector<1x2x8x128xf32>,
    %c6 = arith.constant 6 : index
    %c0_60 = arith.constant 0 : index
    %c0_61 = arith.constant 0 : index
    %c0_62 = arith.constant 0 : index
    %61 = vector.load %arg8[%c6, %c0_60, %c0_61, %c0_62] : memref<8x2x8x128xf32, #tpu.memory_space<vmem>>, vector<1x2x8x128xf32>
    %62 = vector.shape_cast %61 : vector<1x2x8x128xf32> to vector<2x8x128xf32>
    %63 = arith.mulf %5, %5 : vector<2x8x128xf32>
    %64 = vector.shape_cast %63 : vector<2x8x128xf32> to vector<2x1x8x128xf32>
    %cst_63 = arith.constant dense<0.000000e+00> : vector<2x8x128xf32>
    %65 = vector.multi_reduction <add>, %64, %cst_63 [1] : vector<2x1x8x128xf32> to vector<2x8x128xf32>
    %66 = arith.addf %62, %65 : vector<2x8x128xf32>
    %c6_64 = arith.constant 6 : index
    %c0_65 = arith.constant 0 : index
    %c0_66 = arith.constant 0 : index
    %c0_67 = arith.constant 0 : index
    %67 = vector.load %arg8[%c6_64, %c0_65, %c0_66, %c0_67] : memref<8x2x8x128xf32, #tpu.memory_space<vmem>>, vector<1x2x8x128xf32>
    %68 = vector.shape_cast %67 : vector<1x2x8x128xf32> to vector<2x8x128xf32>
    %69 = vector.shape_cast %66 : vector<2x8x128xf32> to vector<1x2x8x128xf32>
    tpu.vector_store %arg8[%c6_64, %c0_65, %c0_66, %c0_67], %69 {strides = array<i32>} : memref<8x2x8x128xf32, #tpu.memory_space<vmem>>, vector<1x2x8x128xf32>,
    %c7 = arith.constant 7 : index
    %c0_68 = arith.constant 0 : index
    %c0_69 = arith.constant 0 : index
    %c0_70 = arith.constant 0 : index
    %70 = vector.load %arg8[%c7, %c0_68, %c0_69, %c0_70] : memref<8x2x8x128xf32, #tpu.memory_space<vmem>>, vector<1x2x8x128xf32>
    %71 = vector.shape_cast %70 : vector<1x2x8x128xf32> to vector<2x8x128xf32>
    %72 = arith.mulf %6, %6 : vector<2x8x128xf32>
    %73 = vector.shape_cast %72 : vector<2x8x128xf32> to vector<2x1x8x128xf32>
    %cst_71 = arith.constant dense<0.000000e+00> : vector<2x8x128xf32>
    %74 = vector.multi_reduction <add>, %73, %cst_71 [1] : vector<2x1x8x128xf32> to vector<2x8x128xf32>
    %75 = arith.addf %71, %74 : vector<2x8x128xf32>
    %c7_72 = arith.constant 7 : index
    %c0_73 = arith.constant 0 : index
    %c0_74 = arith.constant 0 : index
    %c0_75 = arith.constant 0 : index
    %76 = vector.load %arg8[%c7_72, %c0_73, %c0_74, %c0_75] : memref<8x2x8x128xf32, #tpu.memory_space<vmem>>, vector<1x2x8x128xf32>
    %77 = vector.shape_cast %76 : vector<1x2x8x128xf32> to vector<2x8x128xf32>
    %78 = vector.shape_cast %75 : vector<2x8x128xf32> to vector<1x2x8x128xf32>
    tpu.vector_store %arg8[%c7_72, %c0_73, %c0_74, %c0_75], %78 {strides = array<i32>} : memref<8x2x8x128xf32, #tpu.memory_space<vmem>>, vector<1x2x8x128xf32>,
    %c0_i32_76 = arith.constant 0 : i32
    %79 = arith.cmpi eq, %arg2, %c0_i32_76 : i32
    %80 = arith.extui %79 : i1 to i32
    %c0_i32_77 = arith.constant 0 : i32
    %81 = arith.cmpi ne, %80, %c0_i32_77 : i32
    scf.if %81 {
      %c0_78 = arith.constant 0 : index
      %c0_79 = arith.constant 0 : index
      %c0_80 = arith.constant 0 : index
      %c0_81 = arith.constant 0 : index
      %82 = vector.load %arg8[%c0_78, %c0_79, %c0_80, %c0_81] : memref<8x2x8x128xf32, #tpu.memory_space<vmem>>, vector<8x2x8x128xf32>
      %cst_82 = arith.constant dense<0.000000e+00> : vector<8x2x128xf32>
      %83 = vector.multi_reduction <add>, %82, %cst_82 [2] : vector<8x2x8x128xf32> to vector<8x2x128xf32>
      %c0_83 = arith.constant 0 : index
      %c0_84 = arith.constant 0 : index
      %c0_85 = arith.constant 0 : index
      %c0_86 = arith.constant 0 : index
      %84 = vector.load %arg7[%c0_83, %c0_84, %c0_85, %c0_86] : memref<1x8x2x128xf32, #tpu.memory_space<vmem>>, vector<1x8x2x128xf32>
      %85 = vector.shape_cast %84 : vector<1x8x2x128xf32> to vector<8x2x128xf32>
      %86 = vector.shape_cast %83 : vector<8x2x128xf32> to vector<1x8x2x128xf32>
      tpu.vector_store %arg7[%c0_83, %c0_84, %c0_85, %c0_86], %86 {strides = array<i32>} : memref<1x8x2x128xf32, #tpu.memory_space<vmem>>, vector<1x8x2x128xf32>,
    } else {
    }
    return
  }
  func.func @transform_0(%arg0: i32, %arg1: i32, %arg2: i32) -> (i32, i32, i32) {
    %c1_i32 = arith.constant 1 : i32
    %0 = arith.muli %arg0, %c1_i32 : i32
    %1 = arith.addi %0, %arg2 : i32
    %c0_i32 = arith.constant 0 : i32
    %c0_i32_0 = arith.constant 0 : i32
    return %arg1, %1, %c0_i32 : i32, i32, i32
  }
  func.func @transform_1(%arg0: i32, %arg1: i32, %arg2: i32) -> (i32, i32, i32) {
    %c1_i32 = arith.constant 1 : i32
    %0 = arith.muli %arg0, %c1_i32 : i32
    %1 = arith.addi %0, %arg2 : i32
    %c0_i32 = arith.constant 0 : i32
    %c0_i32_0 = arith.constant 0 : i32
    return %arg1, %1, %c0_i32 : i32, i32, i32
  }
  func.func @transform_2(%arg0: i32, %arg1: i32, %arg2: i32) -> (i32, i32, i32) {
    %c1_i32 = arith.constant 1 : i32
    %0 = arith.muli %arg0, %c1_i32 : i32
    %1 = arith.addi %0, %arg2 : i32
    %c0_i32 = arith.constant 0 : i32
    %c0_i32_0 = arith.constant 0 : i32
    return %arg1, %1, %c0_i32 : i32, i32, i32
  }
  func.func @transform_3(%arg0: i32, %arg1: i32, %arg2: i32) -> (i32, i32, i32) {
    %c1_i32 = arith.constant 1 : i32
    %0 = arith.muli %arg0, %c1_i32 : i32
    %1 = arith.addi %0, %arg2 : i32
    %c0_i32 = arith.constant 0 : i32
    %c0_i32_0 = arith.constant 0 : i32
    return %arg1, %1, %c0_i32 : i32, i32, i32
  }
  func.func @transform_4(%arg0: i32, %arg1: i32, %arg2: i32) -> (i32, i32, i32, i32) {
    %c0_i32 = arith.constant 0 : i32
    %c0_i32_0 = arith.constant 0 : i32
    %c0_i32_1 = arith.constant 0 : i32
    return %arg0, %c0_i32, %arg1, %c0_i32_0 : i32, i32, i32, i32
  }
}

</mosaic_0001>

<llo_original>
// kernel: tpu_custom_call.1
$region0: #{tpu_custom_call.1}
  #allocation0 [shape = 'u32[]', space=smem, size = 0x4, offset = 0x4, fixed_abs, tag = 'smem constant byte address 0x4 - core index']
  #allocation1 [shape = 'u32[144,128]{1,0:T(1,128)}', space=vmem, size = 0x12000, scoped, tag = 'internal scratch']
  #allocation2 [shape = 'f32[8,2,8,128]{3,2,1,0:T(8,128)}', space=vmem, size = 0x10000, scoped, tag = 'scratch operand']
  %s0 = inlined_call_operand.hbm [shape: f32[2,8,128], index: 0, kind: input, shape index: {}]
  %s1 = inlined_call_operand.hbm [shape: f32[2,8,128], index: 1, kind: input, shape index: {}]
  %s2 = inlined_call_operand.hbm [shape: f32[2,8,128], index: 2, kind: input, shape index: {}]
  %s3 = inlined_call_operand.hbm [shape: f32[2,8,128], index: 3, kind: input, shape index: {}]
  %s4 = inlined_call_operand.hbm [shape: f32[1,8,2,128], index: 4, kind: output, shape index: {}]
  %s5 = sld [smem:[#allocation0]]
  $region50: #{tpu_custom_call.1} parent=0
    _
  %s7 = ssub.s32 1, %s5
  %s8 = scalar_select 0, %s7, %s5
  $region1: #{tpu_custom_call.1} parent=0
    #allocation3 [shape = 'u8[8192]{0}', space=vmem, size = 0x2000, scoped, tag = 'input window, operand 0, single buffered']
    #allocation4 [shape = 's32[1]{0}', space=sflag, size = 0x4, scoped, tag = 'scoped memory for tpu_custom_call.1']
    #allocation5 [shape = 's32[1]{0}', space=sflag, size = 0x4, scoped, tag = 'scoped memory for tpu_custom_call.1']
    #allocation6 [shape = 'u8[8192]{0}', space=vmem, size = 0x2000, scoped, tag = 'input window, operand 1, single buffered']
    #allocation7 [shape = 's32[1]{0}', space=sflag, size = 0x4, scoped, tag = 'scoped memory for tpu_custom_call.1']
    #allocation8 [shape = 'u8[8192]{0}', space=vmem, size = 0x2000, scoped, tag = 'input window, operand 2, single buffered']
    #allocation9 [shape = 'u8[8192]{0}', space=vmem, size = 0x2000, scoped, tag = 'input window, operand 3, single buffered']
    #allocation10 [shape = 's32[1]{0}', space=sflag, size = 0x4, scoped, tag = 'scoped memory for tpu_custom_call.1']
    #allocation11 [shape = 'u8[8192]{0}', space=vmem, size = 0x2000, scoped, tag = 'output window, operand 0, single buffered']
    %9 = vsyncpa [#allocation4], 0
    %10 = vsyncpa [#allocation7], 0
    %11 = vsyncpa [#allocation10], 0
    %12 = vsyncpa [#allocation5], 0
    // Predicated region
    $region2: #{tpu_custom_call.1} parent=1 // pred_check
      _
    $region3: #{tpu_custom_call.1} parent=1 // pred_check_branch
      %14 = sbr.rel (0) target = $region5
    $region4: #{tpu_custom_call.1} parent=1 // pred_region
      %s15 = sadd.s32 0, 0
      %s17 = ssub.s32 256, 256
      %18 = vsyncadd [#allocation4], %s17
      %s19 = smul.addr %s15, 128
      %s20 = scalar_lea.hbm %s0, %s19
      %s21 = sshll.u32 [#allocation3], 4
      %s22 = int_to_ptr.vmem [resolvable:$true] %s21
      %27 = dma.hbm_to_vmem [thread:$0]  %s20, 256, %s22, [#allocation4], 128, 128, 8
    $region5: #{tpu_custom_call.1} parent=1 // pred_fallthru
      _
    // Predicated region
    $region6: #{tpu_custom_call.1} parent=1 // pred_check
      _
    $region7: #{tpu_custom_call.1} parent=1 // pred_check_branch
      %29 = sbr.rel (0) target = $region9
    $region8: #{tpu_custom_call.1} parent=1 // pred_region
      %s30 = sadd.s32 0, 0
      %s32 = ssub.s32 256, 256
      %33 = vsyncadd [#allocation7], %s32
      %s34 = smul.addr %s30, 128
      %s35 = scalar_lea.hbm %s1, %s34
      %s36 = sshll.u32 [#allocation6], 4
      %s37 = int_to_ptr.vmem [resolvable:$true] %s36
      %42 = dma.hbm_to_vmem [thread:$0]  %s35, 256, %s37, [#allocation7], 128, 128, 8
    $region9: #{tpu_custom_call.1} parent=1 // pred_fallthru
      _
    // Predicated region
    $region10: #{tpu_custom_call.1} parent=1 // pred_check
      _
    $region11: #{tpu_custom_call.1} parent=1 // pred_check_branch
      %44 = sbr.rel (0) target = $region13
    $region12: #{tpu_custom_call.1} parent=1 // pred_region
      %s45 = sadd.s32 0, 0
      %s47 = ssub.s32 256, 256
      %48 = vsyncadd [#allocation7], %s47
      %s49 = smul.addr %s45, 128
      %s50 = scalar_lea.hbm %s2, %s49
      %s51 = sshll.u32 [#allocation8], 4
      %s52 = int_to_ptr.vmem [resolvable:$true] %s51
      %57 = dma.hbm_to_vmem [thread:$0]  %s50, 256, %s52, [#allocation7], 128, 128, 8
    $region13: #{tpu_custom_call.1} parent=1 // pred_fallthru
      _
    // Predicated region
    $region14: #{tpu_custom_call.1} parent=1 // pred_check
      _
    $region15: #{tpu_custom_call.1} parent=1 // pred_check_branch
      %59 = sbr.rel (0) target = $region17
    $region16: #{tpu_custom_call.1} parent=1 // pred_region
      %s60 = sadd.s32 0, 0
      %s62 = ssub.s32 256, 256
      %63 = vsyncadd [#allocation10], %s62
      %s64 = smul.addr %s60, 128
      %s65 = scalar_lea.hbm %s3, %s64
      %s66 = sshll.u32 [#allocation9], 4
      %s67 = int_to_ptr.vmem [resolvable:$true] %s66
      %72 = dma.hbm_to_vmem [thread:$0]  %s65, 256, %s67, [#allocation10], 128, 128, 8
    $region17: #{tpu_custom_call.1} parent=1 // pred_fallthru
      _
    // Predicated region
    $region18: #{tpu_custom_call.1} parent=1 // pred_check
      _
    $region19: #{tpu_custom_call.1} parent=1 // pred_check_branch
      %74 = sbr.rel (0) target = $region21
    $region20: #{tpu_custom_call.1} parent=1 // pred_region
      %75 = dma.done [#allocation4], 256
    $region21: #{tpu_custom_call.1} parent=1 // pred_fallthru
      _
    // Predicated region
    $region22: #{tpu_custom_call.1} parent=1 // pred_check
      _
    $region23: #{tpu_custom_call.1} parent=1 // pred_check_branch
      %77 = sbr.rel (0) target = $region25
    $region24: #{tpu_custom_call.1} parent=1 // pred_region
      %78 = dma.done [#allocation7], 256
    $region25: #{tpu_custom_call.1} parent=1 // pred_fallthru
      _
    // Predicated region
    $region26: #{tpu_custom_call.1} parent=1 // pred_check
      _
    $region27: #{tpu_custom_call.1} parent=1 // pred_check_branch
      %80 = sbr.rel (0) target = $region29
    $region28: #{tpu_custom_call.1} parent=1 // pred_region
      %81 = dma.done [#allocation7], 256
    $region29: #{tpu_custom_call.1} parent=1 // pred_fallthru
      _
    // Predicated region
    $region30: #{tpu_custom_call.1} parent=1 // pred_check
      _
    $region31: #{tpu_custom_call.1} parent=1 // pred_check_branch
      %83 = sbr.rel (0) target = $region33
    $region32: #{tpu_custom_call.1} parent=1 // pred_region
      %84 = dma.done [#allocation10], 256
    $region33: #{tpu_custom_call.1} parent=1 // pred_fallthru
      _
    %s85 = sadd.s32 0, 0
    %s86 = sadd.s32 0, 0
    %s87 = sadd.s32 0, 0
    %s88 = sadd.s32 0, 0
    %p89 = scmp.eq.s32.totalorder 0, 0
    // Predicated region
    $region34: #{tpu_custom_call.1} parent=1 // pred_check
      %p90 = pneg %p89
    $region35: #{tpu_custom_call.1} parent=1 // pred_check_branch
      %92 = sbr.rel (%p90) target = $region37
    $region36: #{tpu_custom_call.1} parent=1 // pred_region
      %93 = vst [vmem:[#allocation2] sm:$0xff] 0.0
      %94 = vst [vmem:[#allocation2 + $0x8] sm:$0xff] 0.0
      %95 = vst [vmem:[#allocation2 + $0x10] sm:$0xff] 0.0
      %96 = vst [vmem:[#allocation2 + $0x18] sm:$0xff] 0.0
      %97 = vst [vmem:[#allocation2 + $0x20] sm:$0xff] 0.0
      %98 = vst [vmem:[#allocation2 + $0x28] sm:$0xff] 0.0
      %99 = vst [vmem:[#allocation2 + $0x30] sm:$0xff] 0.0
      %100 = vst [vmem:[#allocation2 + $0x38] sm:$0xff] 0.0
      %101 = vst [vmem:[#allocation2 + $0x40] sm:$0xff] 0.0
      %102 = vst [vmem:[#allocation2 + $0x48] sm:$0xff] 0.0
      %103 = vst [vmem:[#allocation2 + $0x50] sm:$0xff] 0.0
      %104 = vst [vmem:[#allocation2 + $0x58] sm:$0xff] 0.0
      %105 = vst [vmem:[#allocation2 + $0x60] sm:$0xff] 0.0
      %106 = vst [vmem:[#allocation2 + $0x68] sm:$0xff] 0.0
      %107 = vst [vmem:[#allocation2 + $0x70] sm:$0xff] 0.0
      %108 = vst [vmem:[#allocation2 + $0x78] sm:$0xff] 0.0
    $region37: #{tpu_custom_call.1} parent=1 // pred_fallthru
      _
    %v109 = vld [vmem:[#allocation3] sm:$0xff]
    %v110 = vld [vmem:[#allocation3 + $0x8] sm:$0xff]
    %v111 = vld [vmem:[#allocation6] sm:$0xff]
    %v112 = vld [vmem:[#allocation6 + $0x8] sm:$0xff]
    %v113 = vld [vmem:[#allocation8] sm:$0xff]
    %v114 = vld [vmem:[#allocation8 + $0x8] sm:$0xff]
    %v115 = vld [vmem:[#allocation9] sm:$0xff]
    %v116 = vld [vmem:[#allocation9 + $0x8] sm:$0xff]
    %v117 = vld [vmem:[#allocation2] sm:$0xff]
    %v118 = vld [vmem:[#allocation2 + $0x8] sm:$0xff]
    %v119 = vmul.f32 %v109, %v113
    %v120 = vmul.f32 %v110, %v114
    %v121 = vadd.f32 %v119, 0.0
    %v122 = vadd.f32 %v120, 0.0
    %v123 = vadd.f32 %v117, %v121
    %v124 = vadd.f32 %v118, %v122
    %125 = vst [vmem:[#allocation2] sm:$0xff] %v123
    %126 = vst [vmem:[#allocation2 + $0x8] sm:$0xff] %v124
    %s127 = scalar_lea.vmem [#allocation2], 16
    %v128 = vld [vmem:[%s127] sm:$0xff]
    %v129 = vld [vmem:[%s127 + $0x8] sm:$0xff]
    %v130 = vmul.f32 %v111, %v113
    %v131 = vmul.f32 %v112, %v114
    %v132 = vadd.f32 %v130, 0.0
    %v133 = vadd.f32 %v131, 0.0
    %v134 = vadd.f32 %v128, %v132
    %v135 = vadd.f32 %v129, %v133
    %136 = vst [vmem:[%s127] sm:$0xff] %v134
    %137 = vst [vmem:[%s127 + $0x8] sm:$0xff] %v135
    %s138 = scalar_lea.vmem [#allocation2], 32
    %v139 = vld [vmem:[%s138] sm:$0xff]
    %v140 = vld [vmem:[%s138 + $0x8] sm:$0xff]
    %v141 = vmul.f32 %v109, %v115
    %v142 = vmul.f32 %v110, %v116
    %v143 = vadd.f32 %v141, 0.0
    %v144 = vadd.f32 %v142, 0.0
    %v145 = vadd.f32 %v139, %v143
    %v146 = vadd.f32 %v140, %v144
    %147 = vst [vmem:[%s138] sm:$0xff] %v145
    %148 = vst [vmem:[%s138 + $0x8] sm:$0xff] %v146
    %s149 = scalar_lea.vmem [#allocation2], 48
    %v150 = vld [vmem:[%s149] sm:$0xff]
    %v151 = vld [vmem:[%s149 + $0x8] sm:$0xff]
    %v152 = vmul.f32 %v111, %v115
    %v153 = vmul.f32 %v112, %v116
    %v154 = vadd.f32 %v152, 0.0
    %v155 = vadd.f32 %v153, 0.0
    %v156 = vadd.f32 %v150, %v154
    %v157 = vadd.f32 %v151, %v155
    %158 = vst [vmem:[%s149] sm:$0xff] %v156
    %159 = vst [vmem:[%s149 + $0x8] sm:$0xff] %v157
    %s160 = scalar_lea.vmem [#allocation2], 64
    %v161 = vld [vmem:[%s160] sm:$0xff]
    %v162 = vld [vmem:[%s160 + $0x8] sm:$0xff]
    %v163 = vmul.f32 %v109, %v109
    %v164 = vmul.f32 %v110, %v110
    %v165 = vadd.f32 %v163, 0.0
    %v166 = vadd.f32 %v164, 0.0
    %v167 = vadd.f32 %v161, %v165
    %v168 = vadd.f32 %v162, %v166
    %169 = vst [vmem:[%s160] sm:$0xff] %v167
    %170 = vst [vmem:[%s160 + $0x8] sm:$0xff] %v168
    %s171 = scalar_lea.vmem [#allocation2], 80
    %v172 = vld [vmem:[%s171] sm:$0xff]
    %v173 = vld [vmem:[%s171 + $0x8] sm:$0xff]
    %v174 = vmul.f32 %v111, %v111
    %v175 = vmul.f32 %v112, %v112
    %v176 = vadd.f32 %v174, 0.0
    %v177 = vadd.f32 %v175, 0.0
    %v178 = vadd.f32 %v172, %v176
    %v179 = vadd.f32 %v173, %v177
    %180 = vst [vmem:[%s171] sm:$0xff] %v178
    %181 = vst [vmem:[%s171 + $0x8] sm:$0xff] %v179
    %s182 = scalar_lea.vmem [#allocation2], 96
    %v183 = vld [vmem:[%s182] sm:$0xff]
    %v184 = vld [vmem:[%s182 + $0x8] sm:$0xff]
    %v185 = vmul.f32 %v113, %v113
    %v186 = vmul.f32 %v114, %v114
    %v187 = vadd.f32 %v185, 0.0
    %v188 = vadd.f32 %v186, 0.0
    %v189 = vadd.f32 %v183, %v187
    %v190 = vadd.f32 %v184, %v188
    %191 = vst [vmem:[%s182] sm:$0xff] %v189
    %192 = vst [vmem:[%s182 + $0x8] sm:$0xff] %v190
    %s193 = scalar_lea.vmem [#allocation2], 112
    %v194 = vld [vmem:[%s193] sm:$0xff]
    %v195 = vld [vmem:[%s193 + $0x8] sm:$0xff]
    %v196 = vmul.f32 %v115, %v115
    %v197 = vmul.f32 %v116, %v116
    %v198 = vadd.f32 %v196, 0.0
    %v199 = vadd.f32 %v197, 0.0
    %v200 = vadd.f32 %v194, %v198
    %v201 = vadd.f32 %v195, %v199
    %202 = vst [vmem:[%s193] sm:$0xff] %v200
    %203 = vst [vmem:[%s193 + $0x8] sm:$0xff] %v201
    // Predicated region
    $region38: #{tpu_custom_call.1} parent=1 // pred_check
      %p204 = pneg %p89
    $region39: #{tpu_custom_call.1} parent=1 // pred_check_branch
      %206 = sbr.rel (%p204) target = $region41
    $region40: #{tpu_custom_call.1} parent=1 // pred_region
      %v207 = vld [vmem:[#allocation2] sm:$0xff]
      %v208 = vld [vmem:[#allocation2 + $0x8] sm:$0xff]
      %v209 = vld [vmem:[#allocation2 + $0x10] sm:$0xff]
      %v210 = vld [vmem:[#allocation2 + $0x18] sm:$0xff]
      %v211 = vld [vmem:[#allocation2 + $0x20] sm:$0xff]
      %v212 = vld [vmem:[#allocation2 + $0x28] sm:$0xff]
      %v213 = vld [vmem:[#allocation2 + $0x30] sm:$0xff]
      %v214 = vld [vmem:[#allocation2 + $0x38] sm:$0xff]
      %v215 = vld [vmem:[#allocation2 + $0x40] sm:$0xff]
      %v216 = vld [vmem:[#allocation2 + $0x48] sm:$0xff]
      %v217 = vld [vmem:[#allocation2 + $0x50] sm:$0xff]
      %v218 = vld [vmem:[#allocation2 + $0x58] sm:$0xff]
      %v219 = vld [vmem:[#allocation2 + $0x60] sm:$0xff]
      %v220 = vld [vmem:[#allocation2 + $0x68] sm:$0xff]
      %v221 = vld [vmem:[#allocation2 + $0x70] sm:$0xff]
      %v222 = vld [vmem:[#allocation2 + $0x78] sm:$0xff]
      %v223 = vrot.slane %v207, 4
      %v224 = vadd.f32 %v207, %v223
      %v225 = vrot.slane %v224, 2
      %v226 = vadd.f32 %v224, %v225
      %v227 = vrot.slane %v226, 1
      %v228 = vadd.f32 %v226, %v227
      %v229 = vrot.slane %v208, 4
      %v230 = vadd.f32 %v208, %v229
      %v231 = vrot.slane %v230, 2
      %v232 = vadd.f32 %v230, %v231
      %v233 = vrot.slane %v232, 1
      %v234 = vadd.f32 %v232, %v233
      %v235 = vrot.slane %v209, 4
      %v236 = vadd.f32 %v209, %v235
      %v237 = vrot.slane %v236, 2
      %v238 = vadd.f32 %v236, %v237
      %v239 = vrot.slane %v238, 1
      %v240 = vadd.f32 %v238, %v239
      %v241 = vrot.slane %v210, 4
      %v242 = vadd.f32 %v210, %v241
      %v243 = vrot.slane %v242, 2
      %v244 = vadd.f32 %v242, %v243
      %v245 = vrot.slane %v244, 1
      %v246 = vadd.f32 %v244, %v245
      %v247 = vrot.slane %v211, 4
      %v248 = vadd.f32 %v211, %v247
      %v249 = vrot.slane %v248, 2
      %v250 = vadd.f32 %v248, %v249
      %v251 = vrot.slane %v250, 1
      %v252 = vadd.f32 %v250, %v251
      %v253 = vrot.slane %v212, 4
      %v254 = vadd.f32 %v212, %v253
      %v255 = vrot.slane %v254, 2
      %v256 = vadd.f32 %v254, %v255
      %v257 = vrot.slane %v256, 1
      %v258 = vadd.f32 %v256, %v257
      %v259 = vrot.slane %v213, 4
      %v260 = vadd.f32 %v213, %v259
      %v261 = vrot.slane %v260, 2
      %v262 = vadd.f32 %v260, %v261
      %v263 = vrot.slane %v262, 1
      %v264 = vadd.f32 %v262, %v263
      %v265 = vrot.slane %v214, 4
      %v266 = vadd.f32 %v214, %v265
      %v267 = vrot.slane %v266, 2
      %v268 = vadd.f32 %v266, %v267
      %v269 = vrot.slane %v268, 1
      %v270 = vadd.f32 %v268, %v269
      %v271 = vrot.slane %v215, 4
      %v272 = vadd.f32 %v215, %v271
      %v273 = vrot.slane %v272, 2
      %v274 = vadd.f32 %v272, %v273
      %v275 = vrot.slane %v274, 1
      %v276 = vadd.f32 %v274, %v275
      %v277 = vrot.slane %v216, 4
      %v278 = vadd.f32 %v216, %v277
      %v279 = vrot.slane %v278, 2
      %v280 = vadd.f32 %v278, %v279
      %v281 = vrot.slane %v280, 1
      %v282 = vadd.f32 %v280, %v281
      %v283 = vrot.slane %v217, 4
      %v284 = vadd.f32 %v217, %v283
      %v285 = vrot.slane %v284, 2
      %v286 = vadd.f32 %v284, %v285
      %v287 = vrot.slane %v286, 1
      %v288 = vadd.f32 %v286, %v287
      %v289 = vrot.slane %v218, 4
      %v290 = vadd.f32 %v218, %v289
      %v291 = vrot.slane %v290, 2
      %v292 = vadd.f32 %v290, %v291
      %v293 = vrot.slane %v292, 1
      %v294 = vadd.f32 %v292, %v293
      %v295 = vrot.slane %v219, 4
      %v296 = vadd.f32 %v219, %v295
      %v297 = vrot.slane %v296, 2
      %v298 = vadd.f32 %v296, %v297
      %v299 = vrot.slane %v298, 1
      %v300 = vadd.f32 %v298, %v299
      %v301 = vrot.slane %v220, 4
      %v302 = vadd.f32 %v220, %v301
      %v303 = vrot.slane %v302, 2
      %v304 = vadd.f32 %v302, %v303
      %v305 = vrot.slane %v304, 1
      %v306 = vadd.f32 %v304, %v305
      %v307 = vrot.slane %v221, 4
      %v308 = vadd.f32 %v221, %v307
      %v309 = vrot.slane %v308, 2
      %v310 = vadd.f32 %v308, %v309
      %v311 = vrot.slane %v310, 1
      %v312 = vadd.f32 %v310, %v311
      %v313 = vrot.slane %v222, 4
      %v314 = vadd.f32 %v222, %v313
      %v315 = vrot.slane %v314, 2
      %v316 = vadd.f32 %v314, %v315
      %v317 = vrot.slane %v316, 1
      %v318 = vadd.f32 %v316, %v317
      %vm335 = vcmask 1041409
      %v336 = vsel %vm335, %v234, %v228
      %v337 = vsel %vm335, %v246, %v240
      %v338 = vsel %vm335, %v258, %v252
      %v339 = vsel %vm335, %v270, %v264
      %v340 = vsel %vm335, %v282, %v276
      %v341 = vsel %vm335, %v294, %v288
      %v342 = vsel %vm335, %v306, %v300
      %v343 = vsel %vm335, %v318, %v312
      %352 = vst [vmem:[#allocation11] sm:$0x3] %v336
      %353 = vst [vmem:[#allocation11 + $0x2] sm:$0x3] %v337
      %354 = vst [vmem:[#allocation11 + $0x4] sm:$0x3] %v338
      %355 = vst [vmem:[#allocation11 + $0x6] sm:$0x3] %v339
      %356 = vst [vmem:[#allocation11 + $0x8] sm:$0x3] %v340
      %357 = vst [vmem:[#allocation11 + $0xa] sm:$0x3] %v341
      %358 = vst [vmem:[#allocation11 + $0xc] sm:$0x3] %v342
      %359 = vst [vmem:[#allocation11 + $0xe] sm:$0x3] %v343
    $region41: #{tpu_custom_call.1} parent=1 // pred_fallthru
      _
    // Predicated region
    $region42: #{tpu_custom_call.1} parent=1 // pred_check
      _
    $region43: #{tpu_custom_call.1} parent=1 // pred_check_branch
      %361 = sbr.rel (0) target = $region45
    $region44: #{tpu_custom_call.1} parent=1 // pred_region
      %s363 = ssub.s32 256, 256
      %364 = vsyncadd [#allocation5], %s363
      %s365 = sshll.u32 [#allocation11], 4
      %s366 = int_to_ptr.vmem [resolvable:$true] %s365
      %371 = dma.vmem_to_hbm [thread:$0]  %s366, 256, %s4, [#allocation5], 32, 32, 2
    $region45: #{tpu_custom_call.1} parent=1 // pred_fallthru
      _
    // Predicated region
    $region46: #{tpu_custom_call.1} parent=1 // pred_check
      _
    $region47: #{tpu_custom_call.1} parent=1 // pred_check_branch
      %373 = sbr.rel (0) target = $region49
    $region48: #{tpu_custom_call.1} parent=1 // pred_region
      %374 = dma.done [#allocation5], 256
    $region49: #{tpu_custom_call.1} parent=1 // pred_fallthru
      _
    %375 = vsyncpa [#allocation4], 1
    %376 = vsyncpa [#allocation7], 1
    %377 = vsyncpa [#allocation10], 1
    %378 = vsyncpa [#allocation5], 1

</llo_original>
